<compile_context>
chip_gen: v7x
topology: tpu7x:2x2x1
jax: 0.10.0
libtpu: 0.0.40
codegen_flags: <defaults>
</compile_context>

<pallas_src>
import math

import jax
import jax.numpy as jnp
from jax.experimental import pallas as pl
from jax.experimental.pallas import tpu as pltpu


def _round_up(x, m):
    return ((x + m - 1) // m) * m


# torch F.normalize uses eps=1e-12 on the norm; we clamp the sum-of-squares
# at eps^2 so that rsqrt(max(ssq, eps^2)) == 1 / max(sqrt(ssq), eps).
_EPS_SQ = 1e-24


# --------------------------------------------------------------------------- #
# Fast path: whole problem in one grid step, norm fused                        #
# --------------------------------------------------------------------------- #
def _proxy_small_kernel(a_ref, b_ref, o_ref):
    b = b_ref[...]
    bf = b.astype(jnp.float32)
    ssq = jnp.sum(bf * bf, axis=0, keepdims=True)               # (1, Np) f32
    inv = jax.lax.rsqrt(jnp.maximum(ssq, _EPS_SQ))              # 1/max(||col||, 1e-12)
    acc = jnp.dot(a_ref[...], b, preferred_element_type=jnp.float32)
    o_ref[...] = (acc * inv).astype(o_ref.dtype)


def _proxy_small(a, fc):
    M, K = a.shape
    _, N = fc.shape
    Mp = _round_up(max(M, 1), 16)      # bf16 rows pack 2 per sublane
    Kp = _round_up(K, 16)
    Np = _round_up(N, 128)             # lane-dense output stores

    a_bf = jnp.pad(a.astype(jnp.bfloat16), ((0, Mp - M), (0, Kp - K)))
    b_bf = jnp.pad(fc.astype(jnp.bfloat16), ((0, Kp - K), (0, Np - N)))

    out = pl.pallas_call(
        _proxy_small_kernel,
        out_shape=jax.ShapeDtypeStruct((Mp, Np), jnp.float32),
        grid_spec=pltpu.PrefetchScalarGridSpec(
            num_scalar_prefetch=0,
            grid=(1,),
            in_specs=[pl.BlockSpec((Mp, Kp), lambda i: (0, 0)),
                      pl.BlockSpec((Kp, Np), lambda i: (0, 0))],
            out_specs=pl.BlockSpec((Mp, Np), lambda i: (0, 0)),
        ),
    )(a_bf, b_bf)
    return out[:M, :N]


# --------------------------------------------------------------------------- #
# General path: tiled MXU matmul with fused column-norm epilogue               #
#   out[i, j] = (sum_k a[i, k] * b[k, j]) * rsqrt(max(sum_k b[k, j]^2, eps^2)) #
# --------------------------------------------------------------------------- #
def _proxy_matmul_kernel(a_ref, b_ref, o_ref, acc_ref, ssq_ref):
    k = pl.program_id(2)

    @pl.when(k == 0)
    def _():
        acc_ref[...] = jnp.zeros_like(acc_ref)
        ssq_ref[...] = jnp.zeros_like(ssq_ref)

    b = b_ref[...]
    bf = b.astype(jnp.float32)
    ssq_ref[...] += jnp.sum(bf * bf, axis=0, keepdims=True)     # rides VPU/XLU
    acc_ref[...] += jnp.dot(a_ref[...], b,
                            preferred_element_type=jnp.float32)

    @pl.when(k == pl.num_programs(2) - 1)
    def _():
        inv = jax.lax.rsqrt(jnp.maximum(ssq_ref[...], _EPS_SQ))
        o_ref[...] = (acc_ref[...] * inv).astype(o_ref.dtype)   # single store


def _proxy_tiled(a, fc):
    M, K = a.shape
    _, N = fc.shape

    # ---- adaptive tile selection -------------------------------------------
    tm = min(256, _round_up(max(M, 1), 16))
    Mp = _round_up(M, tm)
    m_blocks = Mp // tm

    Np128 = _round_up(N, 128)
    tn = 128
    for cand in (512, 256):
        # keep >= 2 parallel blocks so both v7x TensorCores can work
        if Np128 % cand == 0 and m_blocks * (Np128 // cand) >= 2:
            tn = cand
            break
    Np = Np128

    if K <= 2048:
        Kp = _round_up(K, 16)
        tk = Kp                                   # full contraction dim, no 128-pad
    else:
        Kp = _round_up(K, 128)
        tk = 128
        for cand in (2048, 1024, 512, 256):
            if Kp % cand == 0:
                tk = cand
                break

    # ---- pad + cast once (bf16 MXU inputs, f32 accumulation) ---------------
    a_bf = jnp.pad(a.astype(jnp.bfloat16), ((0, Mp - M), (0, Kp - K)))
    b_bf = jnp.pad(fc.astype(jnp.bfloat16), ((0, Kp - K), (0, Np - N)))

    out = pl.pallas_call(
        _proxy_matmul_kernel,
        out_shape=jax.ShapeDtypeStruct((Mp, Np), jnp.float32),
        grid_spec=pltpu.PrefetchScalarGridSpec(
            num_scalar_prefetch=0,
            grid=(Mp // tm, Np // tn, Kp // tk),
            in_specs=[pl.BlockSpec((tm, tk), lambda i, j, k: (i, k)),
                      pl.BlockSpec((tk, tn), lambda i, j, k: (k, j))],
            out_specs=pl.BlockSpec((tm, tn), lambda i, j, k: (i, j)),
            scratch_shapes=[pltpu.VMEM((tm, tn), jnp.float32),
                            pltpu.VMEM((1, tn), jnp.float32)]),
        compiler_params=pltpu.CompilerParams(
            dimension_semantics=("parallel", "parallel", "arbitrary")),
    )(a_bf, b_bf)
    return out[:M, :N]


# --------------------------------------------------------------------------- #
# Proxy forward                                                                #
# --------------------------------------------------------------------------- #
def proxy_forward(x, fc):
    """x: (..., dim) f32,  fc: (dim, cN) f32  ->  (..., cN) f32."""
    *lead, K = x.shape
    K2, N = fc.shape
    assert K == K2, (K, K2)
    M = math.prod(lead) if lead else 1

    a = x.reshape(M, K)

    if M <= 256 and K <= 1024 and N <= 1024:
        out = _proxy_small(a, fc)
    else:
        out = _proxy_tiled(a, fc)

    return out.reshape(*lead, N)


# --------------------------------------------------------------------------- #
if __name__ == "__main__":
    key = jax.random.PRNGKey(0)

    # ---- real StarEnhancer Proxy shape (fast path) --------------------------
    dim, cN, batch = 64, 100, 16
    k_fc, k_x, k_fc2, k_x2 = jax.random.split(key, 4)

    # fc initialised like torch.nn.init.xavier_normal_((dim, cN))
    xavier_std = math.sqrt(2.0 / (dim + cN))
    fc = xavier_std * jax.random.normal(k_fc, (dim, cN), jnp.float32)
    x = jax.random.normal(k_x, (batch, dim), jnp.float32)

    out = jax.block_until_ready(proxy_forward(x, fc))

    centers = fc / jnp.maximum(jnp.linalg.norm(fc, axis=0, keepdims=True), 1e-12)
    ref = x @ centers
    assert out.shape == (batch, cN), out.shape
    assert bool(jnp.all(jnp.isfinite(out)))
    rel_err = jnp.max(jnp.abs(out - ref)) / (jnp.max(jnp.abs(ref)) + 1e-8)
    assert bool(rel_err < 3e-2), float(rel_err)   # bf16-input / f32-acc tolerance

    # ---- larger shape exercising the tiled (multi-k) path --------------------
    dim2, cN2, batch2 = 2176, 512, 192
    xavier_std2 = math.sqrt(2.0 / (dim2 + cN2))
    fc2 = xavier_std2 * jax.random.normal(k_fc2, (dim2, cN2), jnp.float32)
    x2 = jax.random.normal(k_x2, (batch2, dim2), jnp.float32)

    out2 = jax.block_until_ready(proxy_forward(x2, fc2))

    centers2 = fc2 / jnp.maximum(jnp.linalg.norm(fc2, axis=0, keepdims=True), 1e-12)
    ref2 = x2 @ centers2
    assert out2.shape == (batch2, cN2), out2.shape
    assert bool(jnp.all(jnp.isfinite(out2)))
    rel_err2 = jnp.max(jnp.abs(out2 - ref2)) / (jnp.max(jnp.abs(ref2)) + 1e-8)
    assert bool(rel_err2 < 3e-2), float(rel_err2)

    print("KERNEL_OK")
</pallas_src>

<mosaic_0001>
module attributes {stable_mosaic.version = 11 : i64} {
  func.func @_proxy_small_kernel(%arg0: i32, %arg1: memref<16x64xbf16, #tpu.memory_space<vmem>>, %arg2: memref<64x128xbf16, #tpu.memory_space<vmem>>, %arg3: memref<16x128xf32, #tpu.memory_space<vmem>>) attributes {dimension_semantics = [#tpu.dimension_semantics<arbitrary>], iteration_bounds = array<i64: 1>, scalar_prefetch = 0 : i64, scratch_operands = 0 : i64, tpu.core_type = #tpu.core_type<tc>, window_params = [{pipeline_mode = #tpu.pipeline_mode<synchronous>, transform_indices = @transform_0, window_bounds = array<i64: 16, 64>}, {pipeline_mode = #tpu.pipeline_mode<synchronous>, transform_indices = @transform_1, window_bounds = array<i64: 64, 128>}, {pipeline_mode = #tpu.pipeline_mode<synchronous>, transform_indices = @transform_2, window_bounds = array<i64: 16, 128>}]} {
    %c0 = arith.constant 0 : index
    %c0_0 = arith.constant 0 : index
    %0 = vector.load %arg2[%c0, %c0_0] : memref<64x128xbf16, #tpu.memory_space<vmem>>, vector<64x128xbf16>
    %1 = arith.extf %0 : vector<64x128xbf16> to vector<64x128xf32>
    %2 = arith.mulf %1, %1 : vector<64x128xf32>
    %cst = arith.constant dense<0.000000e+00> : vector<128xf32>
    %3 = vector.multi_reduction <add>, %2, %cst [0] : vector<64x128xf32> to vector<128xf32>
    %4 = vector.shape_cast %3 : vector<128xf32> to vector<1x128xf32>
    %cst_1 = arith.constant 1.000000e-24 : f32
    %5 = vector.broadcast %cst_1 : f32 to vector<1x128xf32>
    %6 = arith.maximumf %4, %5 : vector<1x128xf32>
    %7 = math.rsqrt %6 : vector<1x128xf32>
    %c0_2 = arith.constant 0 : index
    %c0_3 = arith.constant 0 : index
    %8 = vector.load %arg1[%c0_2, %c0_3] : memref<16x64xbf16, #tpu.memory_space<vmem>>, vector<16x64xbf16>
    %cst_4 = arith.constant dense<0.000000e+00> : vector<16x128xf32>
    %9 = tpu.matmul %8, %0, %cst_4 {dimension_numbers = #tpu.dot_dimension_numbers<[1], [0], [0], [1], [0, 0, 1, 1], [], []>} : vector<16x64xbf16>, vector<64x128xbf16>, vector<16x128xf32> -> vector<16x128xf32>
    %10 = vector.broadcast %7 : vector<1x128xf32> to vector<16x128xf32>
    %11 = arith.mulf %9, %10 : vector<16x128xf32>
    %c0_5 = arith.constant 0 : index
    %c0_6 = arith.constant 0 : index
    %12 = vector.load %arg3[%c0_5, %c0_6] : memref<16x128xf32, #tpu.memory_space<vmem>>, vector<16x128xf32>
    tpu.vector_store %arg3[%c0_5, %c0_6], %11 {strides = array<i32>} : memref<16x128xf32, #tpu.memory_space<vmem>>, vector<16x128xf32>,
    return
  }
  func.func @transform_0(%arg0: i32) -> (i32, i32) {
    %c0_i32 = arith.constant 0 : i32
    %c0_i32_0 = arith.constant 0 : i32
    %c0_i32_1 = arith.constant 0 : i32
    return %c0_i32, %c0_i32_0 : i32, i32
  }
  func.func @transform_1(%arg0: i32) -> (i32, i32) {
    %c0_i32 = arith.constant 0 : i32
    %c0_i32_0 = arith.constant 0 : i32
    %c0_i32_1 = arith.constant 0 : i32
    return %c0_i32, %c0_i32_0 : i32, i32
  }
  func.func @transform_2(%arg0: i32) -> (i32, i32) {
    %c0_i32 = arith.constant 0 : i32
    %c0_i32_0 = arith.constant 0 : i32
    %c0_i32_1 = arith.constant 0 : i32
    return %c0_i32, %c0_i32_0 : i32, i32
  }
}

</mosaic_0001>

<llo_original>
// kernel: tpu_custom_call.1
$region0: #{tpu_custom_call.1}
  #allocation0 [shape = 'u32[]', space=smem, size = 0x4, offset = 0x4, fixed_abs, tag = 'smem constant byte address 0x4 - core index']
  #allocation1 [shape = 'u32[144,128]{1,0:T(1,128)}', space=vmem, size = 0x12000, scoped, tag = 'internal scratch']
  %s0 = inlined_call_operand.hbm [shape: bf16[16,64], index: 0, kind: input, shape index: {}]
  %s1 = inlined_call_operand.hbm [shape: bf16[64,128], index: 1, kind: input, shape index: {}]
  %s2 = inlined_call_operand.hbm [shape: f32[16,128], index: 2, kind: output, shape index: {}]
  %s3 = sld [smem:[#allocation0]]
  $region26: #{tpu_custom_call.1} parent=0
    _
  %s5 = ssub.s32 1, %s3
  %s6 = scalar_select 0, %s5, %s3
  $region1: #{tpu_custom_call.1} parent=0
    #allocation2 [shape = 'u8[4096]{0}', space=vmem, size = 0x1000, scoped, tag = 'input window, operand 0, single buffered']
    #allocation3 [shape = 's32[1]{0}', space=sflag, size = 0x4, scoped, tag = 'scoped memory for tpu_custom_call.1']
    #allocation4 [shape = 's32[1]{0}', space=sflag, size = 0x4, scoped, tag = 'scoped memory for tpu_custom_call.1']
    #allocation5 [shape = 'u8[16384]{0}', space=vmem, size = 0x4000, scoped, tag = 'input window, operand 1, single buffered']
    #allocation6 [shape = 's32[1]{0}', space=sflag, size = 0x4, scoped, tag = 'scoped memory for tpu_custom_call.1']
    #allocation7 [shape = 'u8[8192]{0}', space=vmem, size = 0x2000, scoped, tag = 'output window, operand 0, single buffered']
    %7 = vsyncpa [#allocation3], 0
    %8 = vsyncpa [#allocation6], 0
    %9 = vsyncpa [#allocation4], 0
    // Predicated region
    $region2: #{tpu_custom_call.1} parent=1 // pred_check
      _
    $region3: #{tpu_custom_call.1} parent=1 // pred_check_branch
      %11 = sbr.rel (0) target = $region5
    $region4: #{tpu_custom_call.1} parent=1 // pred_region
      %s13 = ssub.s32 128, 128
      %14 = vsyncadd [#allocation3], %s13
      %s15 = sshll.u32 [#allocation2], 4
      %s16 = int_to_ptr.vmem [resolvable:$true] %s15
      %21 = dma.hbm_to_vmem [thread:$0]  %s0, 128, %s16, [#allocation3], 64, 64, 4
    $region5: #{tpu_custom_call.1} parent=1 // pred_fallthru
      _
    // Predicated region
    $region6: #{tpu_custom_call.1} parent=1 // pred_check
      _
    $region7: #{tpu_custom_call.1} parent=1 // pred_check_branch
      %23 = sbr.rel (0) target = $region9
    $region8: #{tpu_custom_call.1} parent=1 // pred_region
      %s25 = ssub.s32 512, 512
      %26 = vsyncadd [#allocation6], %s25
      %s27 = sshll.u32 [#allocation5], 4
      %s28 = int_to_ptr.vmem [resolvable:$true] %s27
      %33 = dma.hbm_to_vmem [thread:$0]  %s1, 512, %s28, [#allocation6], 64, 64, 4
    $region9: #{tpu_custom_call.1} parent=1 // pred_fallthru
      _
    // Predicated region
    $region10: #{tpu_custom_call.1} parent=1 // pred_check
      _
    $region11: #{tpu_custom_call.1} parent=1 // pred_check_branch
      %35 = sbr.rel (0) target = $region13
    $region12: #{tpu_custom_call.1} parent=1 // pred_region
      %36 = dma.done [#allocation3], 128
    $region13: #{tpu_custom_call.1} parent=1 // pred_fallthru
      _
    // Predicated region
    $region14: #{tpu_custom_call.1} parent=1 // pred_check
      _
    $region15: #{tpu_custom_call.1} parent=1 // pred_check_branch
      %38 = sbr.rel (0) target = $region17
    $region16: #{tpu_custom_call.1} parent=1 // pred_region
      %39 = dma.done [#allocation6], 512
    $region17: #{tpu_custom_call.1} parent=1 // pred_fallthru
      _
    %v41 = vld [vmem:[#allocation5] sm:$0xf]
    %v42 = vld [vmem:[#allocation5 + $0x4] sm:$0xf]
    %v43 = vld [vmem:[#allocation5 + $0x8] sm:$0xf]
    %v44 = vld [vmem:[#allocation5 + $0xc] sm:$0xf]
    %v45 = vld [vmem:[#allocation5 + $0x10] sm:$0xf]
    %v46 = vld [vmem:[#allocation5 + $0x14] sm:$0xf]
    %v47 = vld [vmem:[#allocation5 + $0x18] sm:$0xf]
    %v48 = vld [vmem:[#allocation5 + $0x1c] sm:$0xf]
    %v49 = vunpack.c.l.bf16 %v41
    %v50 = vunpack.c.l.bf16 %v42
    %v51 = vunpack.c.l.bf16 %v43
    %v52 = vunpack.c.l.bf16 %v44
    %v53 = vunpack.c.l.bf16 %v45
    %v54 = vunpack.c.l.bf16 %v46
    %v55 = vunpack.c.l.bf16 %v47
    %v56 = vunpack.c.l.bf16 %v48
    %v57 = vmul.f32 %v49, %v49
    %v58 = vmul.f32 %v50, %v50
    %v59 = vmul.f32 %v51, %v51
    %v60 = vmul.f32 %v52, %v52
    %v61 = vmul.f32 %v53, %v53
    %v62 = vmul.f32 %v54, %v54
    %v63 = vmul.f32 %v55, %v55
    %v64 = vmul.f32 %v56, %v56
    %v65 = vadd.f32 %v57, %v58
    %v66 = vadd.f32 %v65, %v59
    %v67 = vadd.f32 %v66, %v60
    %v68 = vadd.f32 %v67, %v61
    %v69 = vadd.f32 %v68, %v62
    %v70 = vadd.f32 %v69, %v63
    %v71 = vadd.f32 %v70, %v64
    %v72 = vrot.slane %v71, 4
    %v73 = vadd.f32 %v71, %v72
    %v74 = vrot.slane %v73, 2
    %v75 = vadd.f32 %v73, %v74
    %v76 = vrot.slane %v75, 1
    %v77 = vadd.f32 %v75, %v76
    %v78 = vmax.f32 %v77, 1e-24
    %v79 = vrsqrt.pop %v78
    %v80 = vld [vmem:[#allocation2] sm:$0xf]
    %v81 = vld [vmem:[#allocation2 + $0x4] sm:$0xf]
    %v84 = vunpack.c.l.b16 %v80
    %v85 = vunpack.c.l.b16 %v81
    %v86 = vpack.c.b16 %v85, %v84
    %v95 = vunpack.c.l.b16 %v41
    %v96 = vunpack.c.l.b16 %v42
    %v97 = vunpack.c.l.b16 %v43
    %v98 = vunpack.c.l.b16 %v44
    %v99 = vunpack.c.l.b16 %v45
    %v100 = vunpack.c.l.b16 %v46
    %v101 = vunpack.c.l.b16 %v47
    %v102 = vunpack.c.l.b16 %v48
    %v103 = vpack.c.b16 %v96, %v95
    %v104 = vpack.c.b16 %v98, %v97
    %v105 = vpack.c.b16 %v100, %v99
    %v106 = vpack.c.b16 %v102, %v101
    %vm111 = vcmask 523264
    %v113 = vsel %vm111, %v86, 0
    %115 = vmatprep.subr.bf16.mxu0 0
    %116 = vmatpush1.bf16.msra.mxu0 %v103
    %117 = vmatprep.subr.bf16.mxu0 0
    %118 = vmatpush1.bf16.msra.mxu0 %v104
    %119 = vmatprep.subr.bf16.mxu0 0
    %120 = vmatpush1.bf16.msra.mxu0 %v105
    %121 = vmatprep.subr.bf16.mxu0 0
    %122 = vmatpush1.bf16.msra.mxu0 %v106
    %123 = vmatprep.subr.bf16.mxu0 0
    %124 = vmatpush1.bf16.msra.mxu0 0
    %125 = vmatprep.subr.bf16.mxu0 0
    %126 = vmatpush1.bf16.msra.mxu0 0
    %127 = vmatprep.subr.bf16.mxu0 0
    %128 = vmatpush1.bf16.msra.mxu0 0
    %129 = vmatprep.subr.bf16.mxu0 0
    %130 = vmatpush1.bf16.msra.mxu0 0
    %131 = vmatprep.subr.bf16.mxu0 0
    %132 = vmatpush1.bf16.msra.mxu0 0
    %133 = vmatprep.subr.bf16.mxu0 0
    %134 = vmatpush1.bf16.msra.mxu0 0
    %135 = vmatprep.subr.bf16.mxu0 0
    %136 = vmatpush1.bf16.msra.mxu0 0
    %137 = vmatprep.subr.bf16.mxu0 0
    %138 = vmatpush1.bf16.msra.mxu0 0
    %139 = vmatprep.subr.bf16.mxu0 0
    %140 = vmatpush1.bf16.msra.mxu0 0
    %141 = vmatprep.subr.bf16.mxu0 0
    %142 = vmatpush1.bf16.msra.mxu0 0
    %143 = vmatprep.subr.bf16.mxu0 0
    %144 = vmatpush1.bf16.msra.mxu0 0
    %145 = vmatprep.subr.bf16.mxu0 0
    %146 = vmatpush1.bf16.msra.mxu0 0
    %147 = vmatprep.mubr.bf16.mxu0 0
    %148 = vmatmul.mubr.bf16.gmra.mrb[0].mxu0 %v113
    %v149 = vpop.f32.mrb[0].mxu0
    %v150 = vadd.f32 0.0, %v149
    %v151 = vpop.f32.mrb[0].mxu0
    %v152 = vpop.f32.mrb[0].mxu0
    %v153 = vadd.f32 0.0, %v152
    %v154 = vpop.f32.mrb[0].mxu0
    %155 = vdwg.mxu0
    %v156 = vmul.f32 %v150, %v79
    %v157 = vmul.f32 %v153, %v79
    %158 = vst [vmem:[#allocation7] sm:$0xff] %v156
    %159 = vst [vmem:[#allocation7 + $0x8] sm:$0xff] %v157
    // Predicated region
    $region18: #{tpu_custom_call.1} parent=1 // pred_check
      _
    $region19: #{tpu_custom_call.1} parent=1 // pred_check_branch
      %161 = sbr.rel (0) target = $region21
    $region20: #{tpu_custom_call.1} parent=1 // pred_region
      %s163 = ssub.s32 256, 256
      %164 = vsyncadd [#allocation4], %s163
      %s165 = sshll.u32 [#allocation7], 4
      %s166 = int_to_ptr.vmem [resolvable:$true] %s165
      %171 = dma.vmem_to_hbm [thread:$0]  %s166, 256, %s2, [#allocation4], 128, 128, 8
    $region21: #{tpu_custom_call.1} parent=1 // pred_fallthru
      _
    // Predicated region
    $region22: #{tpu_custom_call.1} parent=1 // pred_check
      _
    $region23: #{tpu_custom_call.1} parent=1 // pred_check_branch
      %173 = sbr.rel (0) target = $region25
    $region24: #{tpu_custom_call.1} parent=1 // pred_region
      %174 = dma.done [#allocation4], 256
    $region25: #{tpu_custom_call.1} parent=1 // pred_fallthru
      _
    %175 = vsyncpa [#allocation3], 1
    %176 = vsyncpa [#allocation6], 1
    %177 = vsyncpa [#allocation4], 1

</llo_original>
